<compile_context>
chip_gen: v7x
topology: tpu7x:2x2x1
jax: 0.10.0
libtpu: 0.0.40
codegen_flags: <defaults>
</compile_context>

<pallas_src>
import jax
import jax.numpy as jnp
from jax.experimental import pallas as pl
from jax.experimental.pallas import tpu as pltpu

_LANE = 128
_TARGET_BLOCK_BYTES = 4 * 1024 * 1024  # ~4 MiB per block buffer; double-buffered
                                        # in+out stays well under v7x's 64 MiB VMEM


def _elementwise_kernel(x_ref, o_ref):
    # (x + 2) * 3 - 2.5 == 3*x + 3.5  (constant-folded).
    # Integer inputs are cast here, inside the kernel, so the input is streamed
    # from HBM at its native (narrower) width with no extra wrapper-side pass.
    x = x_ref[...].astype(o_ref.dtype)
    o_ref[...] = x * 3.0 + 3.5


def _round_up(a: int, b: int) -> int:
    return -(-a // b) * b


def _num_tensorcores() -> int:
    """2 on v7x (megacore: 'parallel' grid axes shard across cores), else 1."""
    try:
        kind = jax.devices()[0].device_kind.lower()
    except Exception:
        return 1
    return 2 if "v7" in kind else 1


def _choose_cols(n: int) -> int:
    """Largest lane-dense width (multiple of 128, <= 4096) dividing n, preferring
    widths that leave >= 8 rows.  Returns 0 if n is not a multiple of 128."""
    candidates = (4096, 2048, 1024, 512, 256, 128)
    divisors = [c for c in candidates if n % c == 0]
    if not divisors:
        return 0
    with_rows = [c for c in divisors if n // c >= 8]
    return with_rows[0] if with_rows else divisors[0]


def _pick_tile(total: int, target: int, unit: int, num_tc: int) -> int:
    """Tile size along one axis: a multiple of `unit`, or the full extent.

    Single TC (v5e/v6e): fewest blocks possible (grid is a sequential loop,
    every extra step is ~0.35us pure overhead).
    Two TCs (v7x): even block count, balanced block sizes, so the 'parallel'
    grid axis shards evenly across both cores.
    """
    if total <= target:
        if num_tc >= 2 and total >= 2 * unit:
            return _round_up(pl.cdiv(total, 2), unit)   # exactly 2 balanced blocks
        return total                                    # single full-extent block (always legal)
    nblocks = pl.cdiv(total, target)
    if num_tc >= 2 and nblocks % 2 == 1:
        nblocks += 1                                    # even count for 2-core balance
    return max(unit, _round_up(pl.cdiv(total, nblocks), unit))


def pt_module_forward(x: jax.Array) -> jax.Array:
    """Pallas implementation of (x + 2) * 3 - torch.div(5, 2)."""
    # torch type promotion: subtracting the 2.5 scalar promotes int/bool to float32.
    if jnp.issubdtype(x.dtype, jnp.floating):
        out_dtype = x.dtype
    else:
        out_dtype = jnp.float32

    orig_shape = x.shape
    n = x.size
    in_itemsize = jnp.dtype(x.dtype).itemsize
    out_itemsize = jnp.dtype(out_dtype).itemsize
    # sublane packing must satisfy both the input and the output dtype tilings
    sublane = max(8, 32 // in_itemsize, 32 // out_itemsize)
    num_tc = _num_tensorcores()

    cost = pl.CostEstimate(
        flops=2 * n,
        transcendentals=0,
        bytes_accessed=n * in_itemsize + n * out_itemsize,
    )
    cparams = pltpu.CompilerParams(
        dimension_semantics=("parallel",),
        vmem_limit_bytes=48 * 1024 * 1024,  # safe on v7x (64 MiB physical VMEM)
    )

    cols = _choose_cols(n)
    if cols:
        # Lane-dense 2-D slab (reshape is metadata-only, no HBM copy).
        rows = n // cols
        slab = x.reshape(rows, cols)
        bytes_per_row = cols * max(in_itemsize, out_itemsize)
        target_rows = max(sublane,
                          (_TARGET_BLOCK_BYTES // bytes_per_row) // sublane * sublane)
        tile_rows = _pick_tile(rows, target_rows, sublane, num_tc)
        grid = (pl.cdiv(rows, tile_rows),)  # ragged last block handled by Pallas
        out = pl.pallas_call(
            _elementwise_kernel,
            out_shape=jax.ShapeDtypeStruct((rows, cols), out_dtype),
            grid_spec=pltpu.PrefetchScalarGridSpec(
                num_scalar_prefetch=0,
                grid=grid,
                in_specs=[pl.BlockSpec((tile_rows, cols), lambda i: (i, 0))],
                out_specs=pl.BlockSpec((tile_rows, cols), lambda i: (i, 0)),
            ),
            compiler_params=cparams,
            cost_estimate=cost,
        )(slab)
        return out.reshape(orig_shape)

    # n not a multiple of 128: flat 1-D kernel; Pallas clips the ragged tail
    # block, so there is no jnp.pad before and no slice after (no extra HBM passes).
    flat = x.reshape(-1)
    granule = sublane * _LANE
    if n <= granule:
        tile_elems = n  # single full-extent block (always legal)
    else:
        target_elems = max(
            granule,
            (_TARGET_BLOCK_BYTES // max(in_itemsize, out_itemsize)) // granule * granule)
        tile_elems = _pick_tile(n, target_elems, granule, num_tc)
    grid = (pl.cdiv(n, tile_elems),)
    out = pl.pallas_call(
        _elementwise_kernel,
        out_shape=jax.ShapeDtypeStruct((n,), out_dtype),
        grid_spec=pltpu.PrefetchScalarGridSpec(
            num_scalar_prefetch=0,
            grid=grid,
            in_specs=[pl.BlockSpec((tile_elems,), lambda i: (i,))],
            out_specs=pl.BlockSpec((tile_elems,), lambda i: (i,)),
        ),
        compiler_params=cparams,
        cost_estimate=cost,
    )(flat)
    return out.reshape(orig_shape)


if __name__ == "__main__":
    key = jax.random.PRNGKey(0)

    def ref_fn(v):
        vf = v if jnp.issubdtype(v.dtype, jnp.floating) else v.astype(jnp.float32)
        return (vf + 2.0) * 3.0 - 2.5

    # Primary input consistent with the module (pure elementwise): batch=2, C=4, H=W=16.
    x = jax.random.normal(key, (2, 4, 16, 16), dtype=jnp.float32)
    out = pt_module_forward(x)
    jax.block_until_ready(out)
    assert out.shape == x.shape and out.dtype == x.dtype
    assert jnp.allclose(out, ref_fn(x), atol=1e-5, rtol=1e-6), "f32 mismatch"

    # Integer input: cast happens inside the kernel; output float32 (torch promotion).
    xi = jax.random.randint(key, (2, 4, 16, 16), -50, 50, dtype=jnp.int32)
    oi = pt_module_forward(xi)
    jax.block_until_ready(oi)
    assert oi.dtype == jnp.float32
    assert jnp.allclose(oi, ref_fn(xi), atol=1e-5, rtol=1e-6), "int32 mismatch"

    # Size not divisible by 128: single full-extent 1-D block.
    xs = jax.random.normal(key, (3, 5, 7), dtype=jnp.float32)
    osmall = pt_module_forward(xs)
    jax.block_until_ready(osmall)
    assert jnp.allclose(osmall, ref_fn(xs), atol=1e-5, rtol=1e-6), "small odd-size mismatch"

    # Size not divisible by 128, large enough to need multiple 1-D blocks (ragged tail).
    xl = jax.random.normal(key, (1031, 1031), dtype=jnp.float32)
    olarge = pt_module_forward(xl)
    jax.block_until_ready(olarge)
    assert jnp.allclose(olarge, ref_fn(xl), atol=1e-5, rtol=1e-6), "ragged-tail mismatch"

    print("KERNEL_OK")
</pallas_src>

<mosaic_0001>
module attributes {stable_mosaic.version = 11 : i64} {
  func.func @_elementwise_kernel(%arg0: i32, %arg1: memref<8x256xf32, #tpu.memory_space<vmem>>, %arg2: memref<8x256xf32, #tpu.memory_space<vmem>>) attributes {dimension_semantics = [#tpu.dimension_semantics<parallel>], iteration_bounds = array<i64: 1>, scalar_prefetch = 0 : i64, scratch_operands = 0 : i64, tpu.core_type = #tpu.core_type<tc>, window_params = [{transform_indices = @transform_0, window_bounds = array<i64: 8, 256>}, {transform_indices = @transform_1, window_bounds = array<i64: 8, 256>}]} {
    %c0 = arith.constant 0 : index
    %c0_0 = arith.constant 0 : index
    %0 = vector.load %arg1[%c0, %c0_0] : memref<8x256xf32, #tpu.memory_space<vmem>>, vector<8x256xf32>
    %cst = arith.constant 3.000000e+00 : f32
    %1 = vector.broadcast %cst : f32 to vector<8x256xf32>
    %2 = arith.mulf %0, %1 : vector<8x256xf32>
    %cst_1 = arith.constant 3.500000e+00 : f32
    %3 = vector.broadcast %cst_1 : f32 to vector<8x256xf32>
    %4 = arith.addf %2, %3 : vector<8x256xf32>
    %c0_2 = arith.constant 0 : index
    %c0_3 = arith.constant 0 : index
    %5 = vector.load %arg2[%c0_2, %c0_3] : memref<8x256xf32, #tpu.memory_space<vmem>>, vector<8x256xf32>
    tpu.vector_store %arg2[%c0_2, %c0_3], %4 {strides = array<i32>} : memref<8x256xf32, #tpu.memory_space<vmem>>, vector<8x256xf32>,
    return
  }
  func.func @transform_0(%arg0: i32) -> (i32, i32) {
    %c0_i32 = arith.constant 0 : i32
    %c0_i32_0 = arith.constant 0 : i32
    return %arg0, %c0_i32 : i32, i32
  }
  func.func @transform_1(%arg0: i32) -> (i32, i32) {
    %c0_i32 = arith.constant 0 : i32
    %c0_i32_0 = arith.constant 0 : i32
    return %arg0, %c0_i32 : i32, i32
  }
}

</mosaic_0001>

<llo_original>
// kernel: tpu_custom_call.1
$region0: #{tpu_custom_call.1}
  #allocation0 [shape = 'u32[]', space=smem, size = 0x4, offset = 0x4, fixed_abs, tag = 'smem constant byte address 0x4 - core index']
  #allocation1 [shape = 'u32[144,128]{1,0:T(1,128)}', space=vmem, size = 0x12000, scoped, tag = 'internal scratch']
  %s0 = inlined_call_operand.hbm [shape: f32[8,256], index: 0, kind: input, shape index: {}]
  %s1 = inlined_call_operand.hbm [shape: f32[8,256], index: 1, kind: output, shape index: {}]
  %s2 = sld [smem:[#allocation0]]
  $region18: #{tpu_custom_call.1} parent=0
    _
  %s4 = ssub.s32 1, %s2
  %s5 = scalar_select 0, %s4, %s2
  $region1: #{tpu_custom_call.1} parent=0
    #allocation2 [shape = 'u8[8192]{0}', space=vmem, size = 0x2000, scoped, tag = 'input window, operand 0, single buffered']
    #allocation3 [shape = 's32[1]{0}', space=sflag, size = 0x4, scoped, tag = 'scoped memory for tpu_custom_call.1']
    #allocation4 [shape = 's32[1]{0}', space=sflag, size = 0x4, scoped, tag = 'scoped memory for tpu_custom_call.1']
    #allocation5 [shape = 'u8[8192]{0}', space=vmem, size = 0x2000, scoped, tag = 'output window, operand 0, single buffered']
    %6 = vsyncpa [#allocation3], 0
    %7 = vsyncpa [#allocation4], 0
    // Predicated region
    $region2: #{tpu_custom_call.1} parent=1 // pred_check
      _
    $region3: #{tpu_custom_call.1} parent=1 // pred_check_branch
      %9 = sbr.rel (0) target = $region5
    $region4: #{tpu_custom_call.1} parent=1 // pred_region
      %s11 = ssub.s32 256, 256
      %12 = vsyncadd [#allocation3], %s11
      %s14 = sshll.u32 [#allocation2], 4
      %s15 = int_to_ptr.vmem [resolvable:$true] %s14
      %17 = dma.hbm_to_vmem [thread:$0]  %s0, 256, %s15, [#allocation3]
    $region5: #{tpu_custom_call.1} parent=1 // pred_fallthru
      _
    // Predicated region
    $region6: #{tpu_custom_call.1} parent=1 // pred_check
      _
    $region7: #{tpu_custom_call.1} parent=1 // pred_check_branch
      %19 = sbr.rel (0) target = $region9
    $region8: #{tpu_custom_call.1} parent=1 // pred_region
      %20 = dma.done [#allocation3], 256
    $region9: #{tpu_custom_call.1} parent=1 // pred_fallthru
      _
    %v21 = vld [vmem:[#allocation2] sm:$0xff]
    %v22 = vld [vmem:[#allocation2 + $0x8] sm:$0xff]
    %v23 = vmul.f32 %v21, 3.0
    %v24 = vmul.f32 %v22, 3.0
    %v25 = vadd.f32 %v23, 3.5
    %v26 = vadd.f32 %v24, 3.5
    %27 = vst [vmem:[#allocation5] sm:$0xff] %v25
    %28 = vst [vmem:[#allocation5 + $0x8] sm:$0xff] %v26
    // Predicated region
    $region10: #{tpu_custom_call.1} parent=1 // pred_check
      _
    $region11: #{tpu_custom_call.1} parent=1 // pred_check_branch
      %30 = sbr.rel (0) target = $region13
    $region12: #{tpu_custom_call.1} parent=1 // pred_region
      %s32 = ssub.s32 256, 256
      %33 = vsyncadd [#allocation4], %s32
      %s35 = sshll.u32 [#allocation5], 4
      %s36 = int_to_ptr.vmem [resolvable:$true] %s35
      %38 = dma.vmem_to_hbm [thread:$0]  %s36, 256, %s1, [#allocation4]
    $region13: #{tpu_custom_call.1} parent=1 // pred_fallthru
      _
    // Predicated region
    $region14: #{tpu_custom_call.1} parent=1 // pred_check
      _
    $region15: #{tpu_custom_call.1} parent=1 // pred_check_branch
      %40 = sbr.rel (0) target = $region17
    $region16: #{tpu_custom_call.1} parent=1 // pred_region
      %41 = dma.done [#allocation4], 256
    $region17: #{tpu_custom_call.1} parent=1 // pred_fallthru
      _
    %42 = vsyncpa [#allocation3], 1
    %43 = vsyncpa [#allocation4], 1

</llo_original>
